<compile_context>
chip_gen: v6e
topology: v6e:2x2x1
jax: 0.10.0
libtpu: 0.0.40
codegen_flags: <defaults>
</compile_context>

<pallas_src>
import functools

import jax
import jax.numpy as jnp
from jax.experimental import pallas as pl
from jax.experimental.pallas import tpu as pltpu


def _round_up(x: int, m: int) -> int:
    return (x + m - 1) // m * m


def _squeeze_kernel(x_ref, gamma_ref, o_ref, acc_ref, *, inv_hw: float):
    # x_ref:     (tb, thw)  input tile (rows = b*C + c, lanes = spatial)
    # gamma_ref: (tb, 1)    per-row LayerScaler weight (gamma[c] broadcast over b)
    # o_ref:     (tb, 1)    output tile (resident across the reduction axis)
    # acc_ref:   (tb, 1)    f32 VMEM partial-sum accumulator
    k = pl.program_id(1)

    @pl.when(k == 0)
    def _():
        acc_ref[...] = jnp.zeros_like(acc_ref)

    x = x_ref[...].astype(jnp.float32)                       # per-tile f32 upcast
    acc_ref[...] += jnp.sum(x, axis=-1, keepdims=True)       # XLU cross-lane reduce

    @pl.when(k == pl.num_programs(1) - 1)
    def _():
        g = gamma_ref[...].astype(jnp.float32)
        o_ref[...] = (acc_ref[...] * inv_hw * g).astype(o_ref.dtype)


def squeeze_forward(
    x_nchw: jax.Array,
    gamma: jax.Array,
    *,
    row_tile: int = 256,
    lane_tile: int = 512,
) -> jax.Array:
    """x_nchw: (B, C, H, W), gamma: (C,) -> (B, C).

    out[b, c] = gamma[c] * mean_{h,w} x[b, c, h, w]
    """
    B, C, H, W = x_nchw.shape
    HW = H * W
    R = B * C

    # Flatten to a 2-D row reduction: row = b*C + c, lane = spatial index.
    x2 = x_nchw.reshape(R, HW)
    gamma_rows = jnp.tile(gamma.reshape(1, C), (B, 1)).reshape(R, 1)

    # Tile sizes: sublane tile multiple of 8, lane tile multiple of 128.
    tb = _round_up(min(row_tile, R), 8)
    thw = _round_up(min(lane_tile, HW), 128)

    # Zero-pad to tile multiples (zeros do not perturb the sum; we divide by
    # the true HW, and padded rows are sliced off afterwards).
    R_pad = _round_up(R, tb)
    HW_pad = _round_up(HW, thw)
    if (R_pad, HW_pad) != (R, HW):
        x2 = jnp.pad(x2, ((0, R_pad - R), (0, HW_pad - HW)))
        gamma_rows = jnp.pad(gamma_rows, ((0, R_pad - R), (0, 0)))

    grid = (R_pad // tb, HW_pad // thw)  # rows parallel, HW reduction last

    out2 = pl.pallas_call(
        functools.partial(_squeeze_kernel, inv_hw=1.0 / HW),
        out_shape=jax.ShapeDtypeStruct((R_pad, 1), x_nchw.dtype),
        grid_spec=pltpu.PrefetchScalarGridSpec(
            num_scalar_prefetch=0,
            grid=grid,
            in_specs=[
                pl.BlockSpec((tb, thw), lambda i, k: (i, k)),
                pl.BlockSpec((tb, 1), lambda i, k: (i, 0)),
            ],
            out_specs=pl.BlockSpec((tb, 1), lambda i, k: (i, 0)),
            scratch_shapes=[pltpu.VMEM((tb, 1), jnp.float32)],
        ),
        compiler_params=pltpu.CompilerParams(
            dimension_semantics=("parallel", "arbitrary"),
            vmem_limit_bytes=32 * 1024 * 1024,
        ),
    )(x2, gamma_rows)

    return out2[:R, 0].reshape(B, C)


if __name__ == "__main__":
    key = jax.random.PRNGKey(0)
    kx, kg = jax.random.split(key)

    # --- spec shapes: hidden_dim == C == 4 ---
    B, C, H, W = 2, 4, 16, 16
    init_scale = 1.0

    x = jax.random.normal(kx, (B, C, H, W), dtype=jnp.float32)
    # LayerScaler.__init__: gamma = init_scale * ones(hidden_dim); perturb it so
    # the per-channel scaling path is actually exercised (as after training).
    gamma = init_scale * jnp.ones((C,), dtype=jnp.float32) \
        + 0.1 * jax.random.normal(kg, (C,), dtype=jnp.float32)

    # lane_tile=128 -> 2 reduction steps over HW=256, exercising the accumulator.
    out = squeeze_forward(x, gamma, lane_tile=128)
    out = jax.block_until_ready(out)

    ref = jnp.mean(x, axis=(2, 3)) * gamma[None, :]
    assert out.shape == (B, C)
    assert jnp.allclose(out, ref, atol=1e-5, rtol=1e-5), (out, ref)

    # --- a ragged shape to exercise the padding path ---
    B2, C2, H2, W2 = 3, 5, 7, 9
    x2 = jax.random.normal(kx, (B2, C2, H2, W2), dtype=jnp.float32)
    gamma2 = 0.5 * jnp.ones((C2,), dtype=jnp.float32)
    out2 = jax.block_until_ready(squeeze_forward(x2, gamma2))
    ref2 = jnp.mean(x2, axis=(2, 3)) * gamma2[None, :]
    assert out2.shape == (B2, C2)
    assert jnp.allclose(out2, ref2, atol=1e-5, rtol=1e-5), (out2, ref2)

    print("KERNEL_OK")
</pallas_src>

<mosaic_0001>
module attributes {stable_mosaic.version = 11 : i64} {
  func.func @_squeeze_kernel(%arg0: i32, %arg1: i32, %arg2: memref<8x128xf32, #tpu.memory_space<vmem>>, %arg3: memref<8x1xf32, #tpu.memory_space<vmem>>, %arg4: memref<8x1xf32, #tpu.memory_space<vmem>>, %arg5: memref<8x1xf32, #tpu.memory_space<vmem>>) attributes {dimension_semantics = [#tpu.dimension_semantics<parallel>, #tpu.dimension_semantics<arbitrary>], iteration_bounds = array<i64: 1, 2>, scalar_prefetch = 0 : i64, scratch_operands = 1 : i64, tpu.core_type = #tpu.core_type<tc>, window_params = [{transform_indices = @transform_0, window_bounds = array<i64: 8, 128>}, {transform_indices = @transform_1, window_bounds = array<i64: 8, 1>}, {transform_indices = @transform_2, window_bounds = array<i64: 8, 1>}]} {
    %c0_i32 = arith.constant 0 : i32
    %0 = arith.cmpi eq, %arg1, %c0_i32 : i32
    %1 = arith.extui %0 : i1 to i32
    %c0_i32_0 = arith.constant 0 : i32
    %2 = arith.cmpi ne, %1, %c0_i32_0 : i32
    scf.if %2 {
      %cst_7 = arith.constant 0.000000e+00 : f32
      %12 = vector.broadcast %cst_7 : f32 to vector<8x1xf32>
      %c0_8 = arith.constant 0 : index
      %c0_9 = arith.constant 0 : index
      %13 = vector.load %arg5[%c0_8, %c0_9] : memref<8x1xf32, #tpu.memory_space<vmem>>, vector<8x1xf32>
      tpu.vector_store %arg5[%c0_8, %c0_9], %12 {strides = array<i32>} : memref<8x1xf32, #tpu.memory_space<vmem>>, vector<8x1xf32>,
    } else {
    }
    %c0 = arith.constant 0 : index
    %c0_1 = arith.constant 0 : index
    %3 = vector.load %arg2[%c0, %c0_1] : memref<8x128xf32, #tpu.memory_space<vmem>>, vector<8x128xf32>
    %c0_2 = arith.constant 0 : index
    %c0_3 = arith.constant 0 : index
    %4 = vector.load %arg5[%c0_2, %c0_3] : memref<8x1xf32, #tpu.memory_space<vmem>>, vector<8x1xf32>
    %cst = arith.constant dense<0.000000e+00> : vector<8xf32>
    %5 = vector.multi_reduction <add>, %3, %cst [1] : vector<8x128xf32> to vector<8xf32>
    %6 = vector.shape_cast %5 : vector<8xf32> to vector<8x1xf32>
    %7 = arith.addf %4, %6 : vector<8x1xf32>
    %c0_4 = arith.constant 0 : index
    %c0_5 = arith.constant 0 : index
    %8 = vector.load %arg5[%c0_4, %c0_5] : memref<8x1xf32, #tpu.memory_space<vmem>>, vector<8x1xf32>
    tpu.vector_store %arg5[%c0_4, %c0_5], %7 {strides = array<i32>} : memref<8x1xf32, #tpu.memory_space<vmem>>, vector<8x1xf32>,
    %c1_i32 = arith.constant 1 : i32
    %9 = arith.cmpi eq, %arg1, %c1_i32 : i32
    %10 = arith.extui %9 : i1 to i32
    %c0_i32_6 = arith.constant 0 : i32
    %11 = arith.cmpi ne, %10, %c0_i32_6 : i32
    scf.if %11 {
      %c0_7 = arith.constant 0 : index
      %c0_8 = arith.constant 0 : index
      %12 = vector.load %arg3[%c0_7, %c0_8] : memref<8x1xf32, #tpu.memory_space<vmem>>, vector<8x1xf32>
      %c0_9 = arith.constant 0 : index
      %c0_10 = arith.constant 0 : index
      %13 = vector.load %arg5[%c0_9, %c0_10] : memref<8x1xf32, #tpu.memory_space<vmem>>, vector<8x1xf32>
      %cst_11 = arith.constant 3.906250e-03 : f32
      %14 = vector.broadcast %cst_11 : f32 to vector<8x1xf32>
      %15 = arith.mulf %13, %14 : vector<8x1xf32>
      %16 = arith.mulf %15, %12 : vector<8x1xf32>
      %c0_12 = arith.constant 0 : index
      %c0_13 = arith.constant 0 : index
      %17 = vector.load %arg4[%c0_12, %c0_13] : memref<8x1xf32, #tpu.memory_space<vmem>>, vector<8x1xf32>
      tpu.vector_store %arg4[%c0_12, %c0_13], %16 {strides = array<i32>} : memref<8x1xf32, #tpu.memory_space<vmem>>, vector<8x1xf32>,
    } else {
    }
    return
  }
  func.func @transform_0(%arg0: i32, %arg1: i32) -> (i32, i32) {
    %c0_i32 = arith.constant 0 : i32
    return %arg0, %arg1 : i32, i32
  }
  func.func @transform_1(%arg0: i32, %arg1: i32) -> (i32, i32) {
    %c0_i32 = arith.constant 0 : i32
    %c0_i32_0 = arith.constant 0 : i32
    return %arg0, %c0_i32 : i32, i32
  }
  func.func @transform_2(%arg0: i32, %arg1: i32) -> (i32, i32) {
    %c0_i32 = arith.constant 0 : i32
    %c0_i32_0 = arith.constant 0 : i32
    return %arg0, %c0_i32 : i32, i32
  }
}

</mosaic_0001>

<llo_original>
// kernel: tpu_custom_call.1
$region0: #{tpu_custom_call.1}
  #allocation0 [shape = 'u32[]', space=smem, size = 0x4, offset = 0x4, fixed_abs, tag = 'smem constant byte address 0x4 - core index']
  #allocation1 [shape = 'u32[144,128]{1,0:T(1,128)}', space=vmem, size = 0x12000, scoped, tag = 'internal scratch']
  #allocation2 [shape = 'f32[8,1]{1,0:T(8,128)}', space=vmem, size = 0x1000, scoped, tag = 'scratch operand']
  %s0 = inlined_call_operand.hbm [shape: f32[8,256], index: 0, kind: input, shape index: {}]
  %s1 = inlined_call_operand.vmem [shape: f32[8,1], index: 1, kind: input, shape index: {}]
  %s2 = inlined_call_operand.vmem [shape: f32[8,1], index: 2, kind: output, shape index: {}]
  %s3 = sld [smem:[#allocation0]]
  $region53: #{tpu_custom_call.1} parent=0
    _
  %s5 = ssub.s32 1, %s3
  %s6 = scalar_select 0, %s5, %s3
  $region1: #{tpu_custom_call.1} parent=0
    #allocation3 [shape = 'u8[8192]{0}', space=vmem, size = 0x2000, scoped, tag = 'input window, operand 0']
    #allocation4 [shape = 's32[2]{0}', space=sflag, size = 0x8, scoped, tag = 'scoped memory for tpu_custom_call.1']
    %7 = vsyncpa [#allocation4], 0
    %s8 = scalar_lea.sflag [#allocation4], 1
    %9 = vsyncpa %s8, 0
    loop: start=0, step=1, limit=4
    $region2: #{tpu_custom_call.1} parent=1 // loop_pre_header
      _
    $region3: #{tpu_custom_call.1} parent=1 // loop_header
      %s11 = sphi 0, %s15
      %p12 = scmp.ge.s32.totalorder %s11, 4
      %s18 = sphi 0, %s30
      %s19 = sphi 0, %s26
      %s20 = sphi 0, %s18
      %s21 = sphi 0, %s19
      %s22 = sphi 0, %s20
      %s23 = sphi 0, %s21
      %s35 = sphi 0, %s37
      %s38 = sphi 0, %s35
      %s39 = sphi 0, %s38
      %s55 = sphi 0, %s39
      %s61 = sphi 0, %s63
      %s64 = sphi 0, %s61
      %s65 = sphi 0, %s64
      %s81 = sphi 0, %s65
      %s87 = sphi 0, %s89
      %s90 = sphi 0, %s87
      %s91 = sphi 0, %s90
      %s107 = sphi 0, %s91
    $region4: #{tpu_custom_call.1} parent=1 // loop_header_branch
      %14 = sbr.rel (%p12) target = $region8
    $region5: #{tpu_custom_call.1} parent=1 // loop_body
      %s16 = ssub.s32 %s11, 1
      %s17 = ssub.s32 %s11, 2
      %s24 = sadd.s32 1, %s19
      %p25 = scmp.ge.s32.totalorder %s24, 2
      %s26 = scalar_select %p25, 0, %s24
      %s27 = sadd.s32 1, %s18
      %s28 = scalar_select %p25, %s27, %s18
      %p29 = scmp.ge.s32.totalorder %s28, 1
      %s30 = scalar_select %p29, 0, %s28
      %s31 = ssub.s32 %s18, %s30
      %s32 = ssub.s32 %s19, %s26
      %s33 = sor.u32 %s31, %s32
      %p34 = scmp.eq.s32.totalorder %s33, 0
      %s36 = sadd.s32 %s35, 1
      %s37 = scalar_select %p34, %s35, %s36
      %p40 = pneg %p34
      %p41 = scmp.eq.s32.totalorder %s11, 1
      %p42 = por %p40, %p41
      %p43 = scmp.ne.s32.totalorder %s35, %s38
      %p44 = scmp.eq.s32.totalorder %s11, 0
      %p45 = por %p43, %p44
      %p46 = scmp.ne.s32.totalorder %s35, %s38
      %p47 = scmp.eq.s32.totalorder %s16, 1
      %p48 = por %p46, %p47
      %p49 = scmp.ne.s32.totalorder %s38, %s39
      %p50 = scmp.eq.s32.totalorder %s16, 0
      %p51 = por %p49, %p50
      %p52 = scmp.ne.s32.totalorder %s38, %s39
      %p53 = scmp.eq.s32.totalorder %s17, 1
      %p54 = por %p52, %p53
      %p56 = scmp.ne.s32.totalorder %s39, %s55
      %p57 = scmp.eq.s32.totalorder %s17, 0
      %p58 = por %p56, %p57
      %s59 = ssub.s32 %s18, %s30
      %p60 = scmp.eq.s32.totalorder %s59, 0
      %s62 = sadd.s32 %s61, 1
      %s63 = scalar_select %p60, %s61, %s62
      %p66 = pneg %p60
      %p67 = scmp.eq.s32.totalorder %s11, 1
      %p68 = por %p66, %p67
      %p69 = scmp.ne.s32.totalorder %s61, %s64
      %p70 = scmp.eq.s32.totalorder %s11, 0
      %p71 = por %p69, %p70
      %p72 = scmp.ne.s32.totalorder %s61, %s64
      %p73 = scmp.eq.s32.totalorder %s16, 1
      %p74 = por %p72, %p73
      %p75 = scmp.ne.s32.totalorder %s64, %s65
      %p76 = scmp.eq.s32.totalorder %s16, 0
      %p77 = por %p75, %p76
      %p78 = scmp.ne.s32.totalorder %s64, %s65
      %p79 = scmp.eq.s32.totalorder %s17, 1
      %p80 = por %p78, %p79
      %p82 = scmp.ne.s32.totalorder %s65, %s81
      %p83 = scmp.eq.s32.totalorder %s17, 0
      %p84 = por %p82, %p83
      %s85 = ssub.s32 %s18, %s30
      %p86 = scmp.eq.s32.totalorder %s85, 0
      %s88 = sadd.s32 %s87, 1
      %s89 = scalar_select %p86, %s87, %s88
      %p92 = pneg %p86
      %p93 = scmp.eq.s32.totalorder %s11, 1
      %p94 = por %p92, %p93
      %p95 = scmp.ne.s32.totalorder %s87, %s90
      %p96 = scmp.eq.s32.totalorder %s11, 0
      %p97 = por %p95, %p96
      %p98 = scmp.ne.s32.totalorder %s87, %s90
      %p99 = scmp.eq.s32.totalorder %s16, 1
      %p100 = por %p98, %p99
      %p101 = scmp.ne.s32.totalorder %s90, %s91
      %p102 = scmp.eq.s32.totalorder %s16, 0
      %p103 = por %p101, %p102
      %p104 = scmp.ne.s32.totalorder %s90, %s91
      %p105 = scmp.eq.s32.totalorder %s17, 1
      %p106 = por %p104, %p105
      %p108 = scmp.ne.s32.totalorder %s91, %s107
      %p109 = scmp.eq.s32.totalorder %s17, 0
      %p110 = por %p108, %p109
      %p111 = scmp.le.s32.totalorder 1, %s11
      %p112 = scmp.lt.s32.totalorder %s11, 3
      %p113 = pnand %p111, %p112
      %p114 = pneg %p113
      // Predicated region
      $region9: #{tpu_custom_call.1} parent=5 // pred_check
        _
      $region10: #{tpu_custom_call.1} parent=5 // pred_check_branch
        %116 = sbr.rel (%p113) target = $region12
      $region11: #{tpu_custom_call.1} parent=5 // pred_region
        %s117 = ssub.s32 %s11, 1
        // Predicated region
        $region13: #{tpu_custom_call.1} parent=11 // pred_check
          %p118 = pneg %p77
        $region14: #{tpu_custom_call.1} parent=11 // pred_check_branch
          %120 = sbr.rel (%p118) target = $region16
        $region15: #{tpu_custom_call.1} parent=11 // pred_region
          %p121 = scmp.lt.s32.totalorder %s20, 0
          %s122 = scalar_select %p121, %s20, 0
          %s123 = smul.addr %s122, 8
          %s124 = scalar_lea.vmem %s1, %s123
        $region16: #{tpu_custom_call.1} parent=11 // pred_fallthru
          _
      $region12: #{tpu_custom_call.1} parent=5 // pred_fallthru
        _
      %p125 = scmp.lt.s32.totalorder %s11, 2
      // Predicated region
      $region17: #{tpu_custom_call.1} parent=5 // pred_check
        %p126 = pneg %p125
      $region18: #{tpu_custom_call.1} parent=5 // pred_check_branch
        %128 = sbr.rel (%p126) target = $region20
      $region19: #{tpu_custom_call.1} parent=5 // pred_region
        // Predicated region
        $region21: #{tpu_custom_call.1} parent=19 // pred_check
          %p129 = pneg %p45
        $region22: #{tpu_custom_call.1} parent=19 // pred_check_branch
          %131 = sbr.rel (%p129) target = $region24
        $region23: #{tpu_custom_call.1} parent=19 // pred_region
          %s132 = sand.u32 %s35, 1
          %s133 = scalar_lea.sflag [#allocation4], %s132
          %s134 = sand.u32 %s35, 1
          %s135 = smul.addr %s134, 8
          %s136 = scalar_lea.vmem [#allocation3], %s135
          %s138 = ssub.s32 128, 128
          %139 = vsyncadd %s133, %s138
          %s140 = smul.addr %s18, 2
          %s141 = sadd.s32 %s19, %s140
          %s142 = smul.addr %s141, 128
          %s143 = scalar_lea.hbm %s0, %s142
          %s145 = sshll.u32 %s136, 4
          %s146 = int_to_ptr.vmem [resolvable:$true] %s145
          %148 = dma.hbm_to_vmem [thread:$0]  %s143, 128, %s146, %s133
        $region24: #{tpu_custom_call.1} parent=19 // pred_fallthru
          _
      $region20: #{tpu_custom_call.1} parent=5 // pred_fallthru
        _
      %p149 = scmp.le.s32.totalorder 1, %s11
      %p150 = scmp.lt.s32.totalorder %s11, 3
      %p151 = pnand %p149, %p150
      %p152 = pneg %p151
      // Predicated region
      $region25: #{tpu_custom_call.1} parent=5 // pred_check
        _
      $region26: #{tpu_custom_call.1} parent=5 // pred_check_branch
        %154 = sbr.rel (%p151) target = $region28
      $region27: #{tpu_custom_call.1} parent=5 // pred_region
        %s155 = ssub.s32 %s11, 1
        %s156 = sand.u32 %s38, 1
        %s157 = scalar_lea.sflag [#allocation4], %s156
        %s158 = sand.u32 %s38, 1
        %s159 = smul.addr %s158, 8
        %s160 = scalar_lea.vmem [#allocation3], %s159
        // Predicated region
        $region29: #{tpu_custom_call.1} parent=27 // pred_check
          %p161 = pneg %p51
        $region30: #{tpu_custom_call.1} parent=27 // pred_check_branch
          %163 = sbr.rel (%p161) target = $region32
        $region31: #{tpu_custom_call.1} parent=27 // pred_region
          %164 = dma.done %s157, 128
        $region32: #{tpu_custom_call.1} parent=27 // pred_fallthru
          _
        %s165 = sand.u32 %s38, 1
        %s166 = scalar_lea.sflag [#allocation4], %s165
        %s167 = sand.u32 %s38, 1
        %s168 = smul.addr %s167, 8
        %s169 = scalar_lea.vmem [#allocation3], %s168
        %p170 = pneg %p51
        %p171 = pneg %p48
        %p172 = scmp.lt.s32.totalorder %s20, 0
        %s173 = scalar_select %p172, %s20, 0
        %s174 = smul.addr %s173, 8
        %s175 = scalar_lea.vmem %s1, %s174
        %p176 = pneg %p77
        %p177 = pneg %p74
        %p178 = pneg %p103
        %p179 = pneg %p100
        %p180 = scmp.lt.s32.totalorder %s20, 0
        %s181 = scalar_select %p180, %s20, 0
        %s182 = smul.addr %s181, 8
        %s183 = scalar_lea.vmem %s2, %s182
        %p184 = scmp.lt.s32.totalorder %s20, 0
        %s185 = scalar_select %p184, %s20, 0
        %s186 = smul.addr %s185, 8
        %s187 = scalar_lea.vmem %s1, %s186
        %p188 = scmp.lt.s32.totalorder %s20, 0
        %s189 = scalar_select %p188, %s20, 0
        %s190 = smul.addr %s189, 8
        %s191 = scalar_lea.vmem %s2, %s190
        %p192 = scmp.eq.s32.totalorder %s21, 0
        // Predicated region
        $region33: #{tpu_custom_call.1} parent=27 // pred_check
          %p193 = pneg %p192
        $region34: #{tpu_custom_call.1} parent=27 // pred_check_branch
          %195 = sbr.rel (%p193) target = $region36
        $region35: #{tpu_custom_call.1} parent=27 // pred_region
          %vm196 = vcmask 7168
          %197 = vst.msk [vmem:[#allocation2] sm:$0xff] %vm196, 0.0
        $region36: #{tpu_custom_call.1} parent=27 // pred_fallthru
          _
        %v198 = vld [vmem:[%s160] sm:$0xff]
        %v199 = vld [vmem:[#allocation2] sm:$0xff]
        %200 = vadd.xlane.f32.xlu0 %v198
        %v201 = vpop.xlane.xlu0 %200
        %v202 = vadd.f32 %v199, %v201
        %vm203 = vcmask 7168
        %204 = vst.msk [vmem:[#allocation2] sm:$0xff] %vm203, %v202
        %p205 = scmp.eq.s32.totalorder %s21, 1
        // Predicated region
        $region37: #{tpu_custom_call.1} parent=27 // pred_check
          %p206 = pneg %p205
        $region38: #{tpu_custom_call.1} parent=27 // pred_check_branch
          %208 = sbr.rel (%p206) target = $region40
        $region39: #{tpu_custom_call.1} parent=27 // pred_region
          %v209 = vld [vmem:[%s187] sm:$0xff]
          %v210 = vld [vmem:[#allocation2] sm:$0xff]
          %v211 = vmul.f32 %v210, 0.00390625
          %v212 = vmul.f32 %v211, %v209
          %213 = vst.msk [vmem:[%s191] sm:$0xff] %vm203, %v212
        $region40: #{tpu_custom_call.1} parent=27 // pred_fallthru
          _
        %p214 = scmp.lt.s32.totalorder %s20, 0
        %s215 = scalar_select %p214, %s20, 0
        %s216 = smul.addr %s215, 8
        %s217 = scalar_lea.vmem %s2, %s216
        // Predicated region
        $region41: #{tpu_custom_call.1} parent=27 // pred_check
          %p218 = pneg %p100
        $region42: #{tpu_custom_call.1} parent=27 // pred_check_branch
          %220 = sbr.rel (%p218) target = $region44
        $region43: #{tpu_custom_call.1} parent=27 // pred_region
          _
        $region44: #{tpu_custom_call.1} parent=27 // pred_fallthru
          _
        // Predicated region
        $region45: #{tpu_custom_call.1} parent=27 // pred_check
          %p221 = pneg %p100
        $region46: #{tpu_custom_call.1} parent=27 // pred_check_branch
          %223 = sbr.rel (%p221) target = $region48
        $region47: #{tpu_custom_call.1} parent=27 // pred_region
          %p224 = scmp.lt.s32.totalorder %s20, 0
          %s225 = scalar_select %p224, %s20, 0
          %s226 = smul.addr %s225, 8
          %s227 = scalar_lea.vmem %s2, %s226
        $region48: #{tpu_custom_call.1} parent=27 // pred_fallthru
          _
      $region28: #{tpu_custom_call.1} parent=5 // pred_fallthru
        _
      %p228 = scmp.le.s32.totalorder 2, %s11
      // Predicated region
      $region49: #{tpu_custom_call.1} parent=5 // pred_check
        %p229 = pneg %p228
      $region50: #{tpu_custom_call.1} parent=5 // pred_check_branch
        %231 = sbr.rel (%p229) target = $region52
      $region51: #{tpu_custom_call.1} parent=5 // pred_region
        %s232 = ssub.s32 %s11, 2
      $region52: #{tpu_custom_call.1} parent=5 // pred_fallthru
        _
    $region6: #{tpu_custom_call.1} parent=1 // loop_footer
      %s15 = sadd.s32 1, %s11
    $region7: #{tpu_custom_call.1} parent=1 // loop_footer_branch
      %10 = sbr.rel target = $region3
    $region8: #{tpu_custom_call.1} parent=1 // loop_exit
      _
    %233 = vsyncpa [#allocation4], 1
    %s234 = scalar_lea.sflag [#allocation4], 1
    %235 = vsyncpa %s234, 1

</llo_original>
